<compile_context>
chip_gen: v7x
topology: tpu7x:2x2x1
jax: 0.10.0
libtpu: 0.0.40
codegen_flags: <defaults>
</compile_context>

<pallas_src>
import jax
import jax.numpy as jnp
from jax import lax
from jax.experimental import pallas as pl
from jax.experimental.pallas import tpu as pltpu


# ---------------------------------------------------------------------------
# Kernel
# ---------------------------------------------------------------------------
def _make_kernel(NB, C, HW):
    def kernel(x_ref, st_ref, w1_ref, cm2_ref, cm3_ref, o_ref):
        # x_ref:   (NB, C, HW)   f32
        # st_ref:  (NB, HW, HW)  bf16  per-batch grid_sample operator (x @ ST)
        # w1_ref:  (2, C)        f32   row 0 -> x half, row 1 -> x_fold half
        # cm2/cm3: (HW, HW)      bf16  dense 7x7 'same'-conv operators
        # o_ref:   (NB, 1, HW)   f32
        w1 = w1_ref[...]

        rows = []
        for n in range(NB):
            # 1x1 conv halves as one tiny (2, C) @ (C, HW) dot (f32 acc).
            v = jnp.dot(w1, x_ref[n], preferred_element_type=jnp.float32)
            # Fold of the w1b-contracted row: (1, HW) @ (HW, HW) bf16 matvec.
            fold = jnp.dot(v[1:2, :].astype(jnp.bfloat16), st_ref[n],
                           preferred_element_type=jnp.float32)
            rows.append(v[0:1, :] + fold)
        y1 = rows[0] if NB == 1 else jnp.concatenate(rows, axis=0)
        y1 = jnp.maximum(y1, 0.0)                                 # (NB, HW)

        # Two 7x7 'same' convs as dense bf16 operators, batched over NB rows.
        y2 = jnp.maximum(
            jnp.dot(y1.astype(jnp.bfloat16), cm2_ref[...],
                    preferred_element_type=jnp.float32), 0.0)
        y3 = jnp.dot(y2.astype(jnp.bfloat16), cm3_ref[...],
                     preferred_element_type=jnp.float32)

        o_ref[...] = jax.nn.sigmoid(y3)[:, None, :]               # (NB, 1, HW)

    return kernel


# ---------------------------------------------------------------------------
# Operator construction (host/XLA side)
# ---------------------------------------------------------------------------
def build_bilinear_sampling_matrix_T(grid, H_in, W_in):
    """ST[n, q, p] such that x_fold_flat[n] = x_flat[n] @ ST[n].

    Reproduces torch.nn.functional.grid_sample(mode='bilinear',
    padding_mode='zeros', align_corners=True) for grid (N, H_out, W_out, 2)
    with (x, y) ordering in the last dim.  Built with scatter-adds; returned
    in bfloat16 (kernel dots accumulate in f32)."""
    N, Ho, Wo, _ = grid.shape
    P = Ho * Wo
    Q = H_in * W_in
    gx = grid[..., 0].reshape(N, P).astype(jnp.float32)
    gy = grid[..., 1].reshape(N, P).astype(jnp.float32)
    ix = (gx + 1.0) * 0.5 * (W_in - 1)      # align_corners=True
    iy = (gy + 1.0) * 0.5 * (H_in - 1)
    x0 = jnp.floor(ix)
    y0 = jnp.floor(iy)
    n_idx = jnp.broadcast_to(jnp.arange(N)[:, None], (N, P))
    p_idx = jnp.broadcast_to(jnp.arange(P)[None, :], (N, P))
    st = jnp.zeros((N, Q, P), jnp.float32)
    for dy in (0, 1):
        for dx in (0, 1):
            xc = x0 + dx
            yc = y0 + dy
            w = (1.0 - jnp.abs(ix - xc)) * (1.0 - jnp.abs(iy - yc))
            valid = (xc >= 0) & (xc <= W_in - 1) & (yc >= 0) & (yc <= H_in - 1)
            w = jnp.where(valid, w, 0.0)
            q = (jnp.clip(yc, 0, H_in - 1) * W_in
                 + jnp.clip(xc, 0, W_in - 1)).astype(jnp.int32)
            st = st.at[n_idx, q, p_idx].add(w)
    return st.astype(jnp.bfloat16)


def build_conv7_operator_T(w7, H, W):
    """CM[q, p] such that y_out_flat = y_in_flat @ CM equals the 7x7
    cross-correlation with padding=3 (Conv2d(1,1,7,padding=3,bias=False))."""
    HW = H * W
    OH, OW = jnp.meshgrid(jnp.arange(H), jnp.arange(W), indexing="ij")
    p = (OH * W + OW).reshape(-1)
    cm = jnp.zeros((HW, HW), jnp.float32)
    for ky in range(7):
        for kx in range(7):
            ih = OH + ky - 3
            iw = OW + kx - 3
            valid = ((ih >= 0) & (ih < H) & (iw >= 0) & (iw < W)).reshape(-1)
            q = (jnp.clip(ih, 0, H - 1) * W + jnp.clip(iw, 0, W - 1)).reshape(-1)
            cm = cm.at[q, p].add(jnp.where(valid, w7[ky, kx], 0.0))
    return cm


# ---------------------------------------------------------------------------
# Wrapper
# ---------------------------------------------------------------------------
def _vmem_capacity_bytes(default_bytes=64 * 1024 * 1024):
    """Physical per-core VMEM (64 MiB on v7x, 128 MiB on v5e/v6e)."""
    try:
        info = pltpu.get_tpu_info()
        cap = getattr(info, "vmem_capacity_bytes", None)
        if cap:
            return int(cap)
    except Exception:
        pass
    return default_bytes


def _invariant_spec(block_shape):
    """BlockSpec for a grid-invariant operand; single-buffered when the
    running JAX supports per-operand pipeline_mode (saves VMEM; no overlap is
    lost since the block index never changes)."""
    ndim = len(block_shape)
    index_map = lambda b: (0,) * ndim
    try:
        return pl.BlockSpec(block_shape, index_map,
                            pipeline_mode=pl.Buffered(1))
    except (AttributeError, TypeError):
        return pl.BlockSpec(block_shape, index_map)


@jax.jit
def mirror_attention(x, grid, w1, w2, w3):
    """x: (N,C,H,W); grid: (N,H,W,2); w1: (1,2C,1,1); w2,w3: (1,1,7,7)."""
    N, C, H, W = x.shape
    HW = H * W

    # Batch blocking: NBLK 'parallel' grid steps (one per v7x TensorCore when
    # N >= 2); each step batches NB rows through the conv matmuls.
    NBLK = 2 if N >= 2 else 1
    NB = -(-N // NBLK)
    N_pad = NB * NBLK

    x_flat = x.reshape(N, C, HW).astype(jnp.float32)
    st = build_bilinear_sampling_matrix_T(grid, H, W)          # (N,HW,HW) bf16
    if N_pad != N:
        x_flat = jnp.pad(x_flat, ((0, N_pad - N), (0, 0), (0, 0)))
        st = jnp.pad(st, ((0, N_pad - N), (0, 0), (0, 0)))

    w1_2c = w1.reshape(2, C).astype(jnp.float32)               # [w1a ; w1b]
    cm2 = build_conv7_operator_T(
        w2.reshape(7, 7).astype(jnp.float32), H, W).astype(jnp.bfloat16)
    cm3 = build_conv7_operator_T(
        w3.reshape(7, 7).astype(jnp.float32), H, W).astype(jnp.bfloat16)

    # VMEM budget derived from the chip (64 MiB v7x / 128 MiB v5e,v6e).
    vmem_cap = _vmem_capacity_bytes()
    vmem_limit = int(vmem_cap * 3 // 4)
    est_vmem = (2 * NB * C * HW * 4        # x blocks (double-buffered)
                + 2 * NB * HW * HW * 2     # per-batch ST blocks (bf16)
                + 2 * HW * HW * 2          # conv operators (bf16, 1-buffered)
                + 2 * C * 4                # (2, C) weight tile
                + 2 * NB * HW * 4)         # output blocks
    assert est_vmem < vmem_limit, (
        f"operator blocks need ~{est_vmem} B VMEM (limit {vmem_limit}); "
        "switch ST to the 4-corner gather / convs to a 7x7 stencil")

    out = pl.pallas_call(
        _make_kernel(NB, C, HW),
        out_shape=jax.ShapeDtypeStruct((N_pad, 1, HW), jnp.float32),
        grid_spec=pltpu.PrefetchScalarGridSpec(
            num_scalar_prefetch=0,
            grid=(NBLK,),
            in_specs=[
                pl.BlockSpec((NB, C, HW), lambda b: (b, 0, 0)),    # x
                pl.BlockSpec((NB, HW, HW), lambda b: (b, 0, 0)),   # ST (bf16)
                _invariant_spec((2, C)),                           # w1 tile
                _invariant_spec((HW, HW)),                         # conv2 op
                _invariant_spec((HW, HW)),                         # conv3 op
            ],
            out_specs=pl.BlockSpec((NB, 1, HW), lambda b: (b, 0, 0)),
        ),
        compiler_params=pltpu.CompilerParams(
            dimension_semantics=("parallel",),
            vmem_limit_bytes=vmem_limit),
    )(x_flat, st, w1_2c, cm2, cm3)
    return out[:N].reshape(N, 1, H, W)


# ---------------------------------------------------------------------------
# Pure-JAX reference (f32) for a self-consistency check
# ---------------------------------------------------------------------------
def _grid_sample_ref(x, grid):
    """bilinear, padding_mode='zeros', align_corners=True; grid = (x, y)."""
    N, C, H, W = x.shape
    gx = (grid[..., 0] + 1.0) * 0.5 * (W - 1)
    gy = (grid[..., 1] + 1.0) * 0.5 * (H - 1)
    x0 = jnp.floor(gx)
    y0 = jnp.floor(gy)
    out = jnp.zeros((N, C) + gx.shape[1:], jnp.float32)
    for dy in (0, 1):
        for dx in (0, 1):
            xc = x0 + dx
            yc = y0 + dy
            w = (1.0 - jnp.abs(gx - xc)) * (1.0 - jnp.abs(gy - yc))
            valid = (xc >= 0) & (xc <= W - 1) & (yc >= 0) & (yc <= H - 1)
            w = jnp.where(valid, w, 0.0)
            xi = jnp.clip(xc, 0, W - 1).astype(jnp.int32)
            yi = jnp.clip(yc, 0, H - 1).astype(jnp.int32)
            g = jax.vmap(lambda xn, yn, xin: xn[:, yn, xin])(x, yi, xi)
            out = out + w[:, None, :, :] * g
    return out


def mirror_attention_ref(x, grid, w1, w2, w3):
    x = x.astype(jnp.float32)
    x_fold = _grid_sample_ref(x, grid)
    xc = jnp.concatenate([x, x_fold], axis=1)
    y1 = jax.nn.relu(
        jnp.einsum("nchw,c->nhw", xc, w1.reshape(-1))[:, None, :, :])
    y2 = jax.nn.relu(lax.conv(y1, w2, (1, 1), "SAME"))
    y3 = lax.conv(y2, w3, (1, 1), "SAME")
    return jax.nn.sigmoid(y3)


if __name__ == "__main__":
    key = jax.random.PRNGKey(0)
    kx, kg, k1, k2, k3 = jax.random.split(key, 5)
    N, C, H, W = 2, 4, 16, 16          # module instantiated as Mirror_Attention(2*C)

    x = jax.random.normal(kx, (N, C, H, W), dtype=jnp.float32)
    # sampling grid, slightly outside [-1, 1] to exercise the zero-padding path
    grid = jax.random.uniform(kg, (N, H, W, 2), jnp.float32, -1.2, 1.2)

    # deterministic synthetic parameters of the `process` Sequential (bias-free)
    w1 = 0.35 * jax.random.normal(k1, (1, 2 * C, 1, 1), jnp.float32)  # Conv2d(2C,1,1)
    w2 = 0.14 * jax.random.normal(k2, (1, 1, 7, 7), jnp.float32)      # Conv2d(1,1,7,p=3)
    w3 = 0.14 * jax.random.normal(k3, (1, 1, 7, 7), jnp.float32)      # Conv2d(1,1,7,p=3)

    out = mirror_attention(x, grid, w1, w2, w3)
    out = jax.block_until_ready(out)

    assert out.shape == (N, 1, H, W), out.shape
    assert bool(jnp.all(jnp.isfinite(out)))
    assert bool(jnp.all((out >= 0.0) & (out <= 1.0)))   # sigmoid range

    # Self-consistency vs pure-JAX f32 reference (bf16 operators => ~1e-2 tol)
    ref = jax.block_until_ready(mirror_attention_ref(x, grid, w1, w2, w3))
    max_err = float(jnp.max(jnp.abs(out - ref)))
    assert max_err < 3e-2, f"max abs error vs reference: {max_err}"

    print("KERNEL_OK")
</pallas_src>

<mosaic_0001>
module attributes {stable_mosaic.version = 11 : i64} {
  func.func private @main(%arg0: i32) attributes {dimension_semantics = [#tpu.dimension_semantics<core_parallel>], iteration_bounds = array<i64: 2>, tpu.core_type = #tpu.core_type<sc_scalar_subcore>, window_params = []} {
    return
  }
}

module attributes {stable_mosaic.version = 11 : i64} {
  func.func private @main(%arg0: i32) attributes {dimension_semantics = [#tpu.dimension_semantics<core_parallel>], iteration_bounds = array<i64: 2>, tpu.core_type = #tpu.core_type<sc_scalar_subcore>, window_params = []} {
    return
  }
}

module attributes {stable_mosaic.version = 11 : i64} {
  func.func @kernel(%arg0: i32, %arg1: memref<1x4x256xf32, #tpu.memory_space<vmem>>, %arg2: memref<1x256x256xbf16, #tpu.memory_space<vmem>>, %arg3: memref<2x4xf32, #tpu.memory_space<vmem>>, %arg4: memref<256x256xbf16, #tpu.memory_space<vmem>>, %arg5: memref<256x256xbf16, #tpu.memory_space<vmem>>, %arg6: memref<1x1x256xf32, #tpu.memory_space<vmem>>) attributes {dimension_semantics = [#tpu.dimension_semantics<parallel>], iteration_bounds = array<i64: 2>, scalar_prefetch = 0 : i64, scratch_operands = 0 : i64, tpu.core_type = #tpu.core_type<tc>, window_params = [{transform_indices = @transform_0, window_bounds = array<i64: 1, 4, 256>}, {transform_indices = @transform_1, window_bounds = array<i64: 1, 256, 256>}, {pipeline_mode = #tpu.pipeline_mode<synchronous>, transform_indices = @transform_2, window_bounds = array<i64: 2, 4>}, {pipeline_mode = #tpu.pipeline_mode<synchronous>, transform_indices = @transform_3, window_bounds = array<i64: 256, 256>}, {pipeline_mode = #tpu.pipeline_mode<synchronous>, transform_indices = @transform_4, window_bounds = array<i64: 256, 256>}, {transform_indices = @transform_5, window_bounds = array<i64: 1, 1, 256>}]} {
    %c0 = arith.constant 0 : index
    %c0_0 = arith.constant 0 : index
    %0 = vector.load %arg3[%c0, %c0_0] : memref<2x4xf32, #tpu.memory_space<vmem>>, vector<2x4xf32>
    %c0_1 = arith.constant 0 : index
    %c0_2 = arith.constant 0 : index
    %c0_3 = arith.constant 0 : index
    %1 = vector.load %arg1[%c0_1, %c0_2, %c0_3] : memref<1x4x256xf32, #tpu.memory_space<vmem>>, vector<1x4x256xf32>
    %2 = vector.shape_cast %1 : vector<1x4x256xf32> to vector<4x256xf32>
    %cst = arith.constant dense<0.000000e+00> : vector<2x256xf32>
    %3 = tpu.matmul %0, %2, %cst {dimension_numbers = #tpu.dot_dimension_numbers<[1], [0], [0], [1], [0, 0, 1, 1], [], []>} : vector<2x4xf32>, vector<4x256xf32>, vector<2x256xf32> -> vector<2x256xf32>
    %4 = vector.extract_strided_slice %3 {offsets = [1, 0], sizes = [1, 256], strides = [1, 1]} : vector<2x256xf32> to vector<1x256xf32>
    %5 = arith.truncf %4 : vector<1x256xf32> to vector<1x256xbf16>
    %c0_4 = arith.constant 0 : index
    %c0_5 = arith.constant 0 : index
    %c0_6 = arith.constant 0 : index
    %6 = vector.load %arg2[%c0_4, %c0_5, %c0_6] : memref<1x256x256xbf16, #tpu.memory_space<vmem>>, vector<1x256x256xbf16>
    %7 = vector.shape_cast %6 : vector<1x256x256xbf16> to vector<256x256xbf16>
    %cst_7 = arith.constant dense<0.000000e+00> : vector<1x256xf32>
    %8 = tpu.matmul %5, %7, %cst_7 {dimension_numbers = #tpu.dot_dimension_numbers<[1], [0], [0], [1], [0, 0, 1, 1], [], []>} : vector<1x256xbf16>, vector<256x256xbf16>, vector<1x256xf32> -> vector<1x256xf32>
    %9 = vector.extract_strided_slice %3 {offsets = [0, 0], sizes = [1, 256], strides = [1, 1]} : vector<2x256xf32> to vector<1x256xf32>
    %10 = arith.addf %9, %8 : vector<1x256xf32>
    %cst_8 = arith.constant 0.000000e+00 : f32
    %11 = vector.broadcast %cst_8 : f32 to vector<1x256xf32>
    %12 = arith.maximumf %10, %11 : vector<1x256xf32>
    %13 = arith.truncf %12 : vector<1x256xf32> to vector<1x256xbf16>
    %c0_9 = arith.constant 0 : index
    %c0_10 = arith.constant 0 : index
    %14 = vector.load %arg4[%c0_9, %c0_10] : memref<256x256xbf16, #tpu.memory_space<vmem>>, vector<256x256xbf16>
    %cst_11 = arith.constant dense<0.000000e+00> : vector<1x256xf32>
    %15 = tpu.matmul %13, %14, %cst_11 {dimension_numbers = #tpu.dot_dimension_numbers<[1], [0], [0], [1], [0, 0, 1, 1], [], []>} : vector<1x256xbf16>, vector<256x256xbf16>, vector<1x256xf32> -> vector<1x256xf32>
    %cst_12 = arith.constant 0.000000e+00 : f32
    %16 = vector.broadcast %cst_12 : f32 to vector<1x256xf32>
    %17 = arith.maximumf %15, %16 : vector<1x256xf32>
    %18 = arith.truncf %17 : vector<1x256xf32> to vector<1x256xbf16>
    %c0_13 = arith.constant 0 : index
    %c0_14 = arith.constant 0 : index
    %19 = vector.load %arg5[%c0_13, %c0_14] : memref<256x256xbf16, #tpu.memory_space<vmem>>, vector<256x256xbf16>
    %cst_15 = arith.constant dense<0.000000e+00> : vector<1x256xf32>
    %20 = tpu.matmul %18, %19, %cst_15 {dimension_numbers = #tpu.dot_dimension_numbers<[1], [0], [0], [1], [0, 0, 1, 1], [], []>} : vector<1x256xbf16>, vector<256x256xbf16>, vector<1x256xf32> -> vector<1x256xf32>
    %21 = arith.negf %20 : vector<1x256xf32>
    %22 = math.exp %21 : vector<1x256xf32>
    %cst_16 = arith.constant 1.000000e+00 : f32
    %23 = vector.broadcast %cst_16 : f32 to vector<1x256xf32>
    %24 = arith.addf %23, %22 : vector<1x256xf32>
    %25 = arith.divf %23, %24 : vector<1x256xf32>
    %26 = vector.shape_cast %25 : vector<1x256xf32> to vector<1x1x256xf32>
    %c0_17 = arith.constant 0 : index
    %c0_18 = arith.constant 0 : index
    %c0_19 = arith.constant 0 : index
    %27 = vector.load %arg6[%c0_17, %c0_18, %c0_19] : memref<1x1x256xf32, #tpu.memory_space<vmem>>, vector<1x1x256xf32>
    tpu.vector_store %arg6[%c0_17, %c0_18, %c0_19], %26 {strides = array<i32>} : memref<1x1x256xf32, #tpu.memory_space<vmem>>, vector<1x1x256xf32>,
    return
  }
  func.func @transform_0(%arg0: i32) -> (i32, i32, i32) {
    %c0_i32 = arith.constant 0 : i32
    %c0_i32_0 = arith.constant 0 : i32
    %c0_i32_1 = arith.constant 0 : i32
    return %arg0, %c0_i32, %c0_i32_0 : i32, i32, i32
  }
  func.func @transform_1(%arg0: i32) -> (i32, i32, i32) {
    %c0_i32 = arith.constant 0 : i32
    %c0_i32_0 = arith.constant 0 : i32
    %c0_i32_1 = arith.constant 0 : i32
    return %arg0, %c0_i32, %c0_i32_0 : i32, i32, i32
  }
  func.func @transform_2(%arg0: i32) -> (i32, i32) {
    %c0_i32 = arith.constant 0 : i32
    %c0_i32_0 = arith.constant 0 : i32
    %c0_i32_1 = arith.constant 0 : i32
    return %c0_i32, %c0_i32_0 : i32, i32
  }
  func.func @transform_3(%arg0: i32) -> (i32, i32) {
    %c0_i32 = arith.constant 0 : i32
    %c0_i32_0 = arith.constant 0 : i32
    %c0_i32_1 = arith.constant 0 : i32
    return %c0_i32, %c0_i32_0 : i32, i32
  }
  func.func @transform_4(%arg0: i32) -> (i32, i32) {
    %c0_i32 = arith.constant 0 : i32
    %c0_i32_0 = arith.constant 0 : i32
    %c0_i32_1 = arith.constant 0 : i32
    return %c0_i32, %c0_i32_0 : i32, i32
  }
  func.func @transform_5(%arg0: i32) -> (i32, i32, i32) {
    %c0_i32 = arith.constant 0 : i32
    %c0_i32_0 = arith.constant 0 : i32
    %c0_i32_1 = arith.constant 0 : i32
    return %arg0, %c0_i32, %c0_i32_0 : i32, i32, i32
  }
}

</mosaic_0001>

<llo_original>
// kernel: mirror_attention.1
$region0: #{mirror_attention.1}
  #allocation0 [shape = 'u32[]', space=smem, size = 0x4, offset = 0x4, fixed_abs, tag = 'smem constant byte address 0x4 - core index']
  #allocation1 [shape = 'u32[144,128]{1,0:T(1,128)}', space=vmem, size = 0x12000, scoped, tag = 'internal scratch']
  %s0 = inlined_call_operand.vmem [shape: f32[2,4,256], index: 0, kind: input, shape index: {}]
  %s1 = inlined_call_operand.vmem [shape: bf16[2,256,256], index: 1, kind: input, shape index: {}]
  %s2 = inlined_call_operand.vmem [shape: f32[2,4], index: 2, kind: input, shape index: {}]
  %s3 = inlined_call_operand.vmem [shape: bf16[256,256], index: 3, kind: input, shape index: {}]
  %s4 = inlined_call_operand.vmem [shape: bf16[256,256], index: 4, kind: input, shape index: {}]
  %s5 = inlined_call_operand.vmem [shape: f32[2,1,256], index: 5, kind: output, shape index: {}]
  %s6 = sld [smem:[#allocation0]]
  $region53: #{mirror_attention.1} parent=0
    _
  %s8 = ssub.s32 1, %s6
  %s9 = scalar_select 0, %s8, %s6
  loop: start=0, step=1, limit=4
  $region2: #{mirror_attention.1} parent=0 // loop_pre_header
    _
  $region3: #{mirror_attention.1} parent=0 // loop_header
    %s11 = sphi 0, %s15
    %p12 = scmp.ge.s32.totalorder %s11, 4
    %s21 = sphi 0, %s23
    %s24 = sphi 0, %s21
    %s25 = sphi 0, %s24
    %s41 = sphi 0, %s25
    %s47 = sphi 0, %s49
    %s50 = sphi 0, %s47
    %s51 = sphi 0, %s50
    %s67 = sphi 0, %s51
    %s71 = sphi 0, %s71
    %s73 = sphi 0, %s71
    %s74 = sphi 0, %s73
    %s88 = sphi 0, %s74
    %s92 = sphi 0, %s92
    %s94 = sphi 0, %s92
    %s95 = sphi 0, %s94
    %s109 = sphi 0, %s95
    %s113 = sphi 0, %s113
    %s115 = sphi 0, %s113
    %s116 = sphi 0, %s115
    %s130 = sphi 0, %s116
    %s136 = sphi 0, %s138
    %s139 = sphi 0, %s136
    %s140 = sphi 0, %s139
    %s156 = sphi 0, %s140
  $region4: #{mirror_attention.1} parent=0 // loop_header_branch
    %14 = sbr.rel (%p12) target = $region8
  $region5: #{mirror_attention.1} parent=0 // loop_body
    %s16 = ssub.s32 %s11, 1
    %s17 = ssub.s32 %s11, 2
    %s18 = sadd.s32 %s11, 1
    %s19 = ssub.s32 %s11, %s18
    %p20 = scmp.eq.s32.totalorder %s19, 0
    %s22 = sadd.s32 %s21, 1
    %s23 = scalar_select %p20, %s21, %s22
    %p26 = pneg %p20
    %p27 = scmp.eq.s32.totalorder %s11, 1
    %p28 = por %p26, %p27
    %p29 = scmp.ne.s32.totalorder %s21, %s24
    %p30 = scmp.eq.s32.totalorder %s11, 0
    %p31 = por %p29, %p30
    %p32 = scmp.ne.s32.totalorder %s21, %s24
    %p33 = scmp.eq.s32.totalorder %s16, 1
    %p34 = por %p32, %p33
    %p35 = scmp.ne.s32.totalorder %s24, %s25
    %p36 = scmp.eq.s32.totalorder %s16, 0
    %p37 = por %p35, %p36
    %p38 = scmp.ne.s32.totalorder %s24, %s25
    %p39 = scmp.eq.s32.totalorder %s17, 1
    %p40 = por %p38, %p39
    %p42 = scmp.ne.s32.totalorder %s25, %s41
    %p43 = scmp.eq.s32.totalorder %s17, 0
    %p44 = por %p42, %p43
    %s45 = ssub.s32 %s11, %s18
    %p46 = scmp.eq.s32.totalorder %s45, 0
    %s48 = sadd.s32 %s47, 1
    %s49 = scalar_select %p46, %s47, %s48
    %p52 = pneg %p46
    %p53 = scmp.eq.s32.totalorder %s11, 1
    %p54 = por %p52, %p53
    %p55 = scmp.ne.s32.totalorder %s47, %s50
    %p56 = scmp.eq.s32.totalorder %s11, 0
    %p57 = por %p55, %p56
    %p58 = scmp.ne.s32.totalorder %s47, %s50
    %p59 = scmp.eq.s32.totalorder %s16, 1
    %p60 = por %p58, %p59
    %p61 = scmp.ne.s32.totalorder %s50, %s51
    %p62 = scmp.eq.s32.totalorder %s16, 0
    %p63 = por %p61, %p62
    %p64 = scmp.ne.s32.totalorder %s50, %s51
    %p65 = scmp.eq.s32.totalorder %s17, 1
    %p66 = por %p64, %p65
    %p68 = scmp.ne.s32.totalorder %s51, %s67
    %p69 = scmp.eq.s32.totalorder %s17, 0
    %p70 = por %p68, %p69
    %s72 = sadd.s32 %s71, 1
    %p75 = scmp.eq.s32.totalorder %s11, 1
    %p76 = scmp.ne.s32.totalorder %s71, %s73
    %p77 = scmp.eq.s32.totalorder %s11, 0
    %p78 = por %p76, %p77
    %p79 = scmp.ne.s32.totalorder %s71, %s73
    %p80 = scmp.eq.s32.totalorder %s16, 1
    %p81 = por %p79, %p80
    %p82 = scmp.ne.s32.totalorder %s73, %s74
    %p83 = scmp.eq.s32.totalorder %s16, 0
    %p84 = por %p82, %p83
    %p85 = scmp.ne.s32.totalorder %s73, %s74
    %p86 = scmp.eq.s32.totalorder %s17, 1
    %p87 = por %p85, %p86
    %p89 = scmp.ne.s32.totalorder %s74, %s88
    %p90 = scmp.eq.s32.totalorder %s17, 0
    %p91 = por %p89, %p90
    %s93 = sadd.s32 %s92, 1
    %p96 = scmp.eq.s32.totalorder %s11, 1
    %p97 = scmp.ne.s32.totalorder %s92, %s94
    %p98 = scmp.eq.s32.totalorder %s11, 0
    %p99 = por %p97, %p98
    %p100 = scmp.ne.s32.totalorder %s92, %s94
    %p101 = scmp.eq.s32.totalorder %s16, 1
    %p102 = por %p100, %p101
    %p103 = scmp.ne.s32.totalorder %s94, %s95
    %p104 = scmp.eq.s32.totalorder %s16, 0
    %p105 = por %p103, %p104
    %p106 = scmp.ne.s32.totalorder %s94, %s95
    %p107 = scmp.eq.s32.totalorder %s17, 1
    %p108 = por %p106, %p107
    %p110 = scmp.ne.s32.totalorder %s95, %s109
    %p111 = scmp.eq.s32.totalorder %s17, 0
    %p112 = por %p110, %p111
    %s114 = sadd.s32 %s113, 1
    %p117 = scmp.eq.s32.totalorder %s11, 1
    %p118 = scmp.ne.s32.totalorder %s113, %s115
    %p119 = scmp.eq.s32.totalorder %s11, 0
    %p120 = por %p118, %p119
    %p121 = scmp.ne.s32.totalorder %s113, %s115
    %p122 = scmp.eq.s32.totalorder %s16, 1
    %p123 = por %p121, %p122
    %p124 = scmp.ne.s32.totalorder %s115, %s116
    %p125 = scmp.eq.s32.totalorder %s16, 0
    %p126 = por %p124, %p125
    %p127 = scmp.ne.s32.totalorder %s115, %s116
    %p128 = scmp.eq.s32.totalorder %s17, 1
    %p129 = por %p127, %p128
    %p131 = scmp.ne.s32.totalorder %s116, %s130
    %p132 = scmp.eq.s32.totalorder %s17, 0
    %p133 = por %p131, %p132
    %s134 = ssub.s32 %s11, %s18
    %p135 = scmp.eq.s32.totalorder %s134, 0
    %s137 = sadd.s32 %s136, 1
    %s138 = scalar_select %p135, %s136, %s137
    %p141 = pneg %p135
    %p142 = scmp.eq.s32.totalorder %s11, 1
    %p143 = por %p141, %p142
    %p144 = scmp.ne.s32.totalorder %s136, %s139
    %p145 = scmp.eq.s32.totalorder %s11, 0
    %p146 = por %p144, %p145
    %p147 = scmp.ne.s32.totalorder %s136, %s139
    %p148 = scmp.eq.s32.totalorder %s16, 1
    %p149 = por %p147, %p148
    %p150 = scmp.ne.s32.totalorder %s139, %s140
    %p151 = scmp.eq.s32.totalorder %s16, 0
    %p152 = por %p150, %p151
    %p153 = scmp.ne.s32.totalorder %s139, %s140
    %p154 = scmp.eq.s32.totalorder %s17, 1
    %p155 = por %p153, %p154
    %p157 = scmp.ne.s32.totalorder %s140, %s156
    %p158 = scmp.eq.s32.totalorder %s17, 0
    %p159 = por %p157, %p158
    %p160 = scmp.le.s32.totalorder 1, %s11
    %p161 = scmp.lt.s32.totalorder %s11, 3
    %p162 = pnand %p160, %p161
    %p163 = pneg %p162
    // Predicated region
    $region9: #{mirror_attention.1} parent=5 // pred_check
      _
    $region10: #{mirror_attention.1} parent=5 // pred_check_branch
      %165 = sbr.rel (%p162) target = $region12
    $region11: #{mirror_attention.1} parent=5 // pred_region
      %s166 = ssub.s32 %s11, 1
      // Predicated region
      $region13: #{mirror_attention.1} parent=11 // pred_check
        %p167 = pneg %p84
      $region14: #{mirror_attention.1} parent=11 // pred_check_branch
        %169 = sbr.rel (%p167) target = $region16
      $region15: #{mirror_attention.1} parent=11 // pred_region
        _
      $region16: #{mirror_attention.1} parent=11 // pred_fallthru
        _
      // Predicated region
      $region17: #{mirror_attention.1} parent=11 // pred_check
        %p170 = pneg %p105
      $region18: #{mirror_attention.1} parent=11 // pred_check_branch
        %172 = sbr.rel (%p170) target = $region20
      $region19: #{mirror_attention.1} parent=11 // pred_region
        _
      $region20: #{mirror_attention.1} parent=11 // pred_fallthru
        _
      // Predicated region
      $region21: #{mirror_attention.1} parent=11 // pred_check
        %p173 = pneg %p126
      $region22: #{mirror_attention.1} parent=11 // pred_check_branch
        %175 = sbr.rel (%p173) target = $region24
      $region23: #{mirror_attention.1} parent=11 // pred_region
        _
      $region24: #{mirror_attention.1} parent=11 // pred_fallthru
        _
    $region12: #{mirror_attention.1} parent=5 // pred_fallthru
      _
    %p176 = scmp.lt.s32.totalorder %s11, 2
    // Predicated region
    $region25: #{mirror_attention.1} parent=5 // pred_check
      %p177 = pneg %p176
    $region26: #{mirror_attention.1} parent=5 // pred_check_branch
      %179 = sbr.rel (%p177) target = $region28
    $region27: #{mirror_attention.1} parent=5 // pred_region
      // Predicated region
      $region29: #{mirror_attention.1} parent=27 // pred_check
        %p180 = pneg %p31
      $region30: #{mirror_attention.1} parent=27 // pred_check_branch
        %182 = sbr.rel (%p180) target = $region32
      $region31: #{mirror_attention.1} parent=27 // pred_region
        %p183 = scmp.lt.s32.totalorder %s11, 1
        %s184 = scalar_select %p183, %s11, 1
        %s185 = smul.addr %s184, 2
        %s186 = smul.addr %s185, 4
        %s187 = scalar_lea.vmem %s0, %s186
      $region32: #{mirror_attention.1} parent=27 // pred_fallthru
        _
      // Predicated region
      $region33: #{mirror_attention.1} parent=27 // pred_check
        %p188 = pneg %p57
      $region34: #{mirror_attention.1} parent=27 // pred_check_branch
        %190 = sbr.rel (%p188) target = $region36
      $region35: #{mirror_attention.1} parent=27 // pred_region
        %p191 = scmp.lt.s32.totalorder %s11, 1
        %s192 = scalar_select %p191, %s11, 1
        %s193 = smul.addr %s192, 64
        %s194 = smul.addr %s193, 4
        %s195 = scalar_lea.vmem %s1, %s194
      $region36: #{mirror_attention.1} parent=27 // pred_fallthru
        _
    $region28: #{mirror_attention.1} parent=5 // pred_fallthru
      _
    %p196 = scmp.le.s32.totalorder 1, %s11
    %p197 = scmp.lt.s32.totalorder %s11, 3
    %p198 = pnand %p196, %p197
    %p199 = pneg %p198
    // Predicated region
    $region37: #{mirror_attention.1} parent=5 // pred_check
      _
    $region38: #{mirror_attention.1} parent=5 // pred_check_branch
      %201 = sbr.rel (%p198) target = $region40
    $region39: #{mirror_attention.1} parent=5 // pred_region
      %s202 = ssub.s32 %s11, 1
      %p203 = scmp.lt.s32.totalorder %s16, 1
      %s204 = scalar_select %p203, %s16, 1
      %s205 = smul.addr %s204, 2
      %s206 = smul.addr %s205, 4
      %s207 = scalar_lea.vmem %s0, %s206
      %p208 = pneg %p37
      %p209 = pneg %p34
      %p210 = scmp.lt.s32.totalorder %s16, 1
      %s211 = scalar_select %p210, %s16, 1
      %s212 = smul.addr %s211, 64
      %s213 = smul.addr %s212, 4
      %s214 = scalar_lea.vmem %s1, %s213
      %p215 = pneg %p63
      %p216 = pneg %p60
      %p217 = pneg %p84
      %p218 = pneg %p81
      %p219 = pneg %p105
      %p220 = pneg %p102
      %p221 = pneg %p126
      %p222 = pneg %p123
      %p223 = pneg %p152
      %p224 = pneg %p149
      %p225 = scmp.lt.s32.totalorder %s16, 1
      %s226 = scalar_select %p225, %s16, 1
      %s227 = smul.addr %s226, 2
      %s228 = scalar_lea.vmem %s5, %s227
      %p229 = scmp.lt.s32.totalorder %s16, 1
      %s230 = scalar_select %p229, %s16, 1
      %s231 = smul.addr %s230, 2
      %s232 = smul.addr %s231, 4
      %s233 = scalar_lea.vmem %s0, %s232
      %p234 = scmp.lt.s32.totalorder %s16, 1
      %s235 = scalar_select %p234, %s16, 1
      %s236 = smul.addr %s235, 64
      %s237 = smul.addr %s236, 4
      %s238 = scalar_lea.vmem %s1, %s237
      %p239 = scmp.lt.s32.totalorder %s16, 1
      %s240 = scalar_select %p239, %s16, 1
      %s241 = smul.addr %s240, 2
      %s242 = scalar_lea.vmem %s5, %s241
      %v243 = vld [vmem:[%s2] sm:$0x3]
      %v244 = vld [vmem:[%s233] sm:$0xff]
      %v246 = vcombine.high %v244, %v244
      %vm247 = vcmask 31744
      %v249 = vsel %vm247, %v243, 0
      %vm251 = vcmask 1043456
      %v252 = vsel %vm251, %v244, 0
      %v254 = vsel %vm251, %v246, 0
      %256 = vmatprep.subr.mxu0 %v254
      %257 = vmatpush1.msra.mxu0 %v252
      %258 = vmatprep.subr.mxu0 0.0
      %259 = vmatpush1.msra.mxu0 0.0
      %260 = vmatprep.subr.mxu0 0.0
      %261 = vmatpush1.msra.mxu0 0.0
      %262 = vmatprep.subr.mxu0 0.0
      %263 = vmatpush1.msra.mxu0 0.0
      %264 = vmatprep.subr.mxu0 0.0
      %265 = vmatpush1.msra.mxu0 0.0
      %266 = vmatprep.subr.mxu0 0.0
      %267 = vmatpush1.msra.mxu0 0.0
      %268 = vmatprep.subr.mxu0 0.0
      %269 = vmatpush1.msra.mxu0 0.0
      %270 = vmatprep.subr.mxu0 0.0
      %271 = vmatpush1.msra.mxu0 0.0
      %272 = vmatprep.subr.mxu0 0.0
      %273 = vmatpush1.msra.mxu0 0.0
      %274 = vmatprep.subr.mxu0 0.0
      %275 = vmatpush1.msra.mxu0 0.0
      %276 = vmatprep.subr.mxu0 0.0
      %277 = vmatpush1.msra.mxu0 0.0
      %278 = vmatprep.subr.mxu0 0.0
      %279 = vmatpush1.msra.mxu0 0.0
      %280 = vmatprep.subr.mxu0 0.0
      %281 = vmatpush1.msra.mxu0 0.0
      %282 = vmatprep.subr.mxu0 0.0
      %283 = vmatpush1.msra.mxu0 0.0
      %284 = vmatprep.subr.mxu0 0.0
      %285 = vmatpush1.msra.mxu0 0.0
      %286 = vmatprep.subr.mxu0 0.0
      %287 = vmatpush1.msra.mxu0 0.0
      %288 = vmatprep.subr.mxu0 0.0
      %289 = vmatpush1.msra.mxu0 0.0
      %290 = vmatprep.subr.mxu0 0.0
      %291 = vmatpush1.msra.mxu0 0.0
      %292 = vmatprep.subr.mxu0 0.0
      %293 = vmatpush1.msra.mxu0 0.0
      %294 = vmatprep.subr.mxu0 0.0
      %295 = vmatpush1.msra.mxu0 0.0
      %296 = vmatprep.subr.mxu0 0.0
      %297 = vmatpush1.msra.mxu0 0.0
      %298 = vmatprep.subr.mxu0 0.0
      %299 = vmatpush1.msra.mxu0 0.0
      %300 = vmatprep.subr.mxu0 0.0
      %301 = vmatpush1.msra.mxu0 0.0
      %302 = vmatprep.subr.mxu0 0.0
      %303 = vmatpush1.msra.mxu0 0.0
      %304 = vmatprep.subr.mxu0 0.0
      %305 = vmatpush1.msra.mxu0 0.0
      %306 = vmatprep.subr.mxu0 0.0
      %307 = vmatpush1.msra.mxu0 0.0
      %308 = vmatprep.subr.mxu0 0.0
      %309 = vmatpush1.msra.mxu0 0.0
      %310 = vmatprep.subr.mxu0 0.0
      %311 = vmatpush1.msra.mxu0 0.0
      %312 = vmatprep.subr.mxu0 0.0
      %313 = vmatpush1.msra.mxu0 0.0
      %314 = vmatprep.subr.mxu0 0.0
      %315 = vmatpush1.msra.mxu0 0.0
      %316 = vmatprep.subr.mxu0 0.0
      %317 = vmatpush1.msra.mxu0 0.0
      %318 = vmatprep.subr.mxu0 0.0
      %319 = vmatpush1.msra.mxu0 0.0
      %320 = vmatprep.mubr.f32.mxu0 0.0
      %321 = vmatmul.mubr.f32.gmra.mrb[0].mxu0 %v249
      %v322 = vpop.f32.mrb[0].mxu0
      %v323 = vadd.f32 0.0, %v322
      %v324 = vpop.f32.mrb[0].mxu0
      %v325 = vadd.f32 0.0, %v324
      %326 = vdwg.mxu0
      %v327 = vpack.c.bf16 %v323, %v323
      %v328 = vpack.c.bf16 %v325, %v325
      %v329 = vld [vmem:[%s238] sm:$0xff]
      %v330 = vld [vmem:[%s238 + $0x8] sm:$0xff]
      %v331 = vld [vmem:[%s238 + $0x10] sm:$0xff]
      %v332 = vld [vmem:[%s238 + $0x18] sm:$0xff]
      %v333 = vld [vmem:[%s238 + $0x20] sm:$0xff]
      %v334 = vld [vmem:[%s238 + $0x28] sm:$0xff]
      %v335 = vld [vmem:[%s238 + $0x30] sm:$0xff]
      %v336 = vld [vmem:[%s238 + $0x38] sm:$0xff]
      %v337 = vld [vmem:[%s238 + $0x40] sm:$0xff]
      %v338 = vld [vmem:[%s238 + $0x48] sm:$0xff]
      %v339 = vld [vmem:[%s238 + $0x50] sm:$0xff]
      %v340 = vld [vmem:[%s238 + $0x58] sm:$0xff]
      %v341 = vld [vmem:[%s238 + $0x60] sm:$0xff]
      %v342 = vld [vmem:[%s238 + $0x68] sm:$0xff]
      %v343 = vld [vmem:[%s238 + $0x70] sm:$0xff]
      %v344 = vld [vmem:[%s238 + $0x78] sm:$0xff]
      %v345 = vld [vmem:[%s238 + $0x80] sm:$0xff]
      %v346 = vld [vmem:[%s238 + $0x88] sm:$0xff]
      %v347 = vld [vmem:[%s238 + $0x90] sm:$0xff]
      %v348 = vld [vmem:[%s238 + $0x98] sm:$0xff]
      %v349 = vld [vmem:[%s238 + $0xa0] sm:$0xff]
      %v350 = vld [vmem:[%s238 + $0xa8] sm:$0xff]
      %v351 = vld [vmem:[%s238 + $0xb0] sm:$0xff]
      %v352 = vld [vmem:[%s238 + $0xb8] sm:$0xff]
      %v353 = vld [vmem:[%s238 + $0xc0] sm:$0xff]
      %v354 = vld [vmem:[%s238 + $0xc8] sm:$0xff]
      %v355 = vld [vmem:[%s238 + $0xd0] sm:$0xff]
      %v356 = vld [vmem:[%s238 + $0xd8] sm:$0xff]
      %v357 = vld [vmem:[%s238 + $0xe0] sm:$0xff]
      %v358 = vld [vmem:[%s238 + $0xe8] sm:$0xff]
      %v359 = vld [vmem:[%s238 + $0xf0] sm:$0xff]
      %v360 = vld [vmem:[%s238 + $0xf8] sm:$0xff]
      %v362 = vshrl.u32 %v327, 16
      %v365 = vshrl.u32 %v328, 16
      %v401 = vunpack.c.l.b16 %v329
      %v402 = vunpack.c.h.b16 %v329
      %v403 = vunpack.c.l.b16 %v330
      %v404 = vunpack.c.h.b16 %v330
      %v405 = vunpack.c.l.b16 %v331
      %v406 = vunpack.c.h.b16 %v331
      %v407 = vunpack.c.l.b16 %v332
      %v408 = vunpack.c.h.b16 %v332
      %v409 = vunpack.c.l.b16 %v333
      %v410 = vunpack.c.h.b16 %v333
      %v411 = vunpack.c.l.b16 %v334
      %v412 = vunpack.c.h.b16 %v334
      %v413 = vunpack.c.l.b16 %v335
      %v414 = vunpack.c.h.b16 %v335
      %v415 = vunpack.c.l.b16 %v336
      %v416 = vunpack.c.h.b16 %v336
      %v417 = vunpack.c.l.b16 %v337
      %v418 = vunpack.c.h.b16 %v337
      %v419 = vunpack.c.l.b16 %v338
      %v420 = vunpack.c.h.b16 %v338
      %v421 = vunpack.c.l.b16 %v339
      %v422 = vunpack.c.h.b16 %v339
      %v423 = vunpack.c.l.b16 %v340
      %v424 = vunpack.c.h.b16 %v340
      %v425 = vunpack.c.l.b16 %v341
      %v426 = vunpack.c.h.b16 %v341
      %v427 = vunpack.c.l.b16 %v342
      %v428 = vunpack.c.h.b16 %v342
      %v429 = vunpack.c.l.b16 %v343
      %v430 = vunpack.c.h.b16 %v343
      %v431 = vunpack.c.l.b16 %v344
      %v432 = vunpack.c.h.b16 %v344
      %v433 = vunpack.c.l.b16 %v345
      %v434 = vunpack.c.h.b16 %v345
      %v435 = vunpack.c.l.b16 %v346
      %v436 = vunpack.c.h.b16 %v346
      %v437 = vunpack.c.l.b16 %v347
      %v438 = vunpack.c.h.b16 %v347
      %v439 = vunpack.c.l.b16 %v348
      %v440 = vunpack.c.h.b16 %v348
      %v441 = vunpack.c.l.b16 %v349
      %v442 = vunpack.c.h.b16 %v349
      %v443 = vunpack.c.l.b16 %v350
      %v444 = vunpack.c.h.b16 %v350
      %v445 = vunpack.c.l.b16 %v351
      %v446 = vunpack.c.h.b16 %v351
      %v447 = vunpack.c.l.b16 %v352
      %v448 = vunpack.c.h.b16 %v352
      %v449 = vunpack.c.l.b16 %v353
      %v450 = vunpack.c.h.b16 %v353
      %v451 = vunpack.c.l.b16 %v354
      %v452 = vunpack.c.h.b16 %v354
      %v453 = vunpack.c.l.b16 %v355
      %v454 = vunpack.c.h.b16 %v355
      %v455 = vunpack.c.l.b16 %v356
      %v456 = vunpack.c.h.b16 %v356
      %v457 = vunpack.c.l.b16 %v357
      %v458 = vunpack.c.h.b16 %v357
      %v459 = vunpack.c.l.b16 %v358
      %v460 = vunpack.c.h.b16 %v358
      %v461 = vunpack.c.l.b16 %v359
      %v462 = vunpack.c.h.b16 %v359
      %v463 = vunpack.c.l.b16 %v360
      %v464 = vunpack.c.h.b16 %v360
      %v465 = vpack.c.b16 %v403, %v401
      %v466 = vpack.c.b16 %v404, %v402
      %v467 = vpack.c.b16 %v407, %v405
      %v468 = vpack.c.b16 %v408, %v406
      %v469 = vpack.c.b16 %v411, %v409
      %v470 = vpack.c.b16 %v412, %v410
      %v471 = vpack.c.b16 %v415, %v413
      %v472 = vpack.c.b16 %v416, %v414
      %v473 = vpack.c.b16 %v419, %v417
      %v474 = vpack.c.b16 %v420, %v418
      %v475 = vpack.c.b16 %v423, %v421
      %v476 = vpack.c.b16 %v424, %v422
      %v477 = vpack.c.b16 %v427, %v425
      %v478 = vpack.c.b16 %v428, %v426
      %v479 = vpack.c.b16 %v431, %v429
      %v480 = vpack.c.b16 %v432, %v430
      %v481 = vpack.c.b16 %v435, %v433
      %v482 = vpack.c.b16 %v436, %v434
      %v483 = vpack.c.b16 %v439, %v437
      %v484 = vpack.c.b16 %v440, %v438
      %v485 = vpack.c.b16 %v443, %v441
      %v486 = vpack.c.b16 %v444, %v442
      %v487 = vpack.c.b16 %v447, %v445
      %v488 = vpack.c.b16 %v448, %v446
      %v489 = vpack.c.b16 %v451, %v449
      %v490 = vpack.c.b16 %v452, %v450
      %v491 = vpack.c.b16 %v455, %v453
      %v492 = vpack.c.b16 %v456, %v454
      %v493 = vpack.c.b16 %v459, %v457
      %v494 = vpack.c.b16 %v460, %v458
      %v495 = vpack.c.b16 %v463, %v461
      %v496 = vpack.c.b16 %v464, %v462
      %529 = vmatprep.subr.bf16.mxu0 %v466
      %530 = vmatpush1.bf16.msra.mxu0 %v465
      %531 = vmatprep.subr.bf16.mxu0 %v468
      %532 = vmatpush1.bf16.msra.mxu0 %v467
      %533 = vmatprep.subr.bf16.mxu0 %v470
      %534 = vmatpush1.bf16.msra.mxu0 %v469
      %535 = vmatprep.subr.bf16.mxu0 %v472
      %536 = vmatpush1.bf16.msra.mxu0 %v471
      %537 = vmatprep.subr.bf16.mxu0 %v474
      %538 = vmatpush1.bf16.msra.mxu0 %v473
      %539 = vmatprep.subr.bf16.mxu0 %v476
      %540 = vmatpush1.bf16.msra.mxu0 %v475
      %541 = vmatprep.subr.bf16.mxu0 %v478
      %542 = vmatpush1.bf16.msra.mxu0 %v477
      %543 = vmatprep.subr.bf16.mxu0 %v480
      %544 = vmatpush1.bf16.msra.mxu0 %v479
      %545 = vmatprep.subr.bf16.mxu0 %v482
      %546 = vmatpush1.bf16.msra.mxu0 %v481
      %547 = vmatprep.subr.bf16.mxu0 %v484
      %548 = vmatpush1.bf16.msra.mxu0 %v483
      %549 = vmatprep.subr.bf16.mxu0 %v486
      %550 = vmatpush1.bf16.msra.mxu0 %v485
      %551 = vmatprep.subr.bf16.mxu0 %v488
      %552 = vmatpush1.bf16.msra.mxu0 %v487
      %553 = vmatprep.subr.bf16.mxu0 %v490
      %554 = vmatpush1.bf16.msra.mxu0 %v489
      %555 = vmatprep.subr.bf16.mxu0 %v492
      %556 = vmatpush1.bf16.msra.mxu0 %v491
      %557 = vmatprep.subr.bf16.mxu0 %v494
      %558 = vmatpush1.bf16.msra.mxu0 %v493
      %559 = vmatprep.subr.bf16.mxu0 %v496
      %560 = vmatpush1.bf16.msra.mxu0 %v495
      %561 = vmatprep.mubr.bf16.mxu0 %v365
      %562 = vmatmul.mubr.bf16.gmra.mrb[0].mxu0 %v362
      %v563 = vpop.f32.mrb[0].mxu0
      %v564 = vadd.f32 0.0, %v563
      %v565 = vpop.f32.mrb[0].mxu0
      %v566 = vadd.f32 0.0, %v565
      %v567 = vpop.f32.mrb[0].mxu0
      %v568 = vpop.f32.mrb[0].mxu0
      %569 = vdwg.mxu0
      %v570 = vadd.f32 %v323, %v564
      %v571 = vadd.f32 %v325, %v566
      %v572 = vmax.f32 %v570, 0.0
      %v573 = vmax.f32 %v571, 0.0
      %v574 = vpack.c.bf16 %v572, %v572
      %v575 = vpack.c.bf16 %v573, %v573
      %v576 = vld [vmem:[%s3] sm:$0xff]
      %v577 = vld [vmem:[%s3 + $0x8] sm:$0xff]
      %v578 = vld [vmem:[%s3 + $0x10] sm:$0xff]
      %v579 = vld [vmem:[%s3 + $0x18] sm:$0xff]
      %v580 = vld [vmem:[%s3 + $0x20] sm:$0xff]
      %v581 = vld [vmem:[%s3 + $0x28] sm:$0xff]
      %v582 = vld [vmem:[%s3 + $0x30] sm:$0xff]
      %v583 = vld [vmem:[%s3 + $0x38] sm:$0xff]
      %v584 = vld [vmem:[%s3 + $0x40] sm:$0xff]
      %v585 = vld [vmem:[%s3 + $0x48] sm:$0xff]
      %v586 = vld [vmem:[%s3 + $0x50] sm:$0xff]
      %v587 = vld [vmem:[%s3 + $0x58] sm:$0xff]
      %v588 = vld [vmem:[%s3 + $0x60] sm:$0xff]
      %v589 = vld [vmem:[%s3 + $0x68] sm:$0xff]
      %v590 = vld [vmem:[%s3 + $0x70] sm:$0xff]
      %v591 = vld [vmem:[%s3 + $0x78] sm:$0xff]
      %v592 = vld [vmem:[%s3 + $0x80] sm:$0xff]
      %v593 = vld [vmem:[%s3 + $0x88] sm:$0xff]
      %v594 = vld [vmem:[%s3 + $0x90] sm:$0xff]
      %v595 = vld [vmem:[%s3 + $0x98] sm:$0xff]
      %v596 = vld [vmem:[%s3 + $0xa0] sm:$0xff]
      %v597 = vld [vmem:[%s3 + $0xa8] sm:$0xff]
      %v598 = vld [vmem:[%s3 + $0xb0] sm:$0xff]
      %v599 = vld [vmem:[%s3 + $0xb8] sm:$0xff]
      %v600 = vld [vmem:[%s3 + $0xc0] sm:$0xff]
      %v601 = vld [vmem:[%s3 + $0xc8] sm:$0xff]
      %v602 = vld [vmem:[%s3 + $0xd0] sm:$0xff]
      %v603 = vld [vmem:[%s3 + $0xd8] sm:$0xff]
      %v604 = vld [vmem:[%s3 + $0xe0] sm:$0xff]
      %v605 = vld [vmem:[%s3 + $0xe8] sm:$0xff]
      %v606 = vld [vmem:[%s3 + $0xf0] sm:$0xff]
      %v607 = vld [vmem:[%s3 + $0xf8] sm:$0xff]
      %v640 = vunpack.c.l.b16 %v576
      %v641 = vunpack.c.h.b16 %v576
      %v642 = vunpack.c.l.b16 %v577
      %v643 = vunpack.c.h.b16 %v577
      %v644 = vunpack.c.l.b16 %v578
      %v645 = vunpack.c.h.b16 %v578
      %v646 = vunpack.c.l.b16 %v579
      %v647 = vunpack.c.h.b16 %v579
      %v648 = vunpack.c.l.b16 %v580
      %v649 = vunpack.c.h.b16 %v580
      %v650 = vunpack.c.l.b16 %v581
      %v651 = vunpack.c.h.b16 %v581
      %v652 = vunpack.c.l.b16 %v582
      %v653 = vunpack.c.h.b16 %v582
      %v654 = vunpack.c.l.b16 %v583
      %v655 = vunpack.c.h.b16 %v583
      %v656 = vunpack.c.l.b16 %v584
      %v657 = vunpack.c.h.b16 %v584
      %v658 = vunpack.c.l.b16 %v585
      %v659 = vunpack.c.h.b16 %v585
      %v660 = vunpack.c.l.b16 %v586
      %v661 = vunpack.c.h.b16 %v586
      %v662 = vunpack.c.l.b16 %v587
      %v663 = vunpack.c.h.b16 %v587
      %v664 = vunpack.c.l.b16 %v588
      %v665 = vunpack.c.h.b16 %v588
      %v666 = vunpack.c.l.b16 %v589
      %v667 = vunpack.c.h.b16 %v589
      %v668 = vunpack.c.l.b16 %v590
      %v669 = vunpack.c.h.b16 %v590
      %v670 = vunpack.c.l.b16 %v591
      %v671 = vunpack.c.h.b16 %v591
      %v672 = vunpack.c.l.b16 %v592
      %v673 = vunpack.c.h.b16 %v592
      %v674 = vunpack.c.l.b16 %v593
      %v675 = vunpack.c.h.b16 %v593
      %v676 = vunpack.c.l.b16 %v594
      %v677 = vunpack.c.h.b16 %v594
      %v678 = vunpack.c.l.b16 %v595
      %v679 = vunpack.c.h.b16 %v595
      %v680 = vunpack.c.l.b16 %v596
      %v681 = vunpack.c.h.b16 %v596
      %v682 = vunpack.c.l.b16 %v597
      %v683 = vunpack.c.h.b16 %v597
      %v684 = vunpack.c.l.b16 %v598
      %v685 = vunpack.c.h.b16 %v598
      %v686 = vunpack.c.l.b16 %v599
      %v687 = vunpack.c.h.b16 %v599
      %v688 = vunpack.c.l.b16 %v600
      %v689 = vunpack.c.h.b16 %v600
      %v690 = vunpack.c.l.b16 %v601
      %v691 = vunpack.c.h.b16 %v601
      %v692 = vunpack.c.l.b16 %v602
      %v693 = vunpack.c.h.b16 %v602
      %v694 = vunpack.c.l.b16 %v603
      %v695 = vunpack.c.h.b16 %v603
      %v696 = vunpack.c.l.b16 %v604
      %v697 = vunpack.c.h.b16 %v604
      %v698 = vunpack.c.l.b16 %v605
      %v699 = vunpack.c.h.b16 %v605
      %v700 = vunpack.c.l.b16 %v606
      %v701 = vunpack.c.h.b16 %v606
      %v702 = vunpack.c.l.b16 %v607
      %v703 = vunpack.c.h.b16 %v607
      %v704 = vpack.c.b16 %v642, %v640
      %v705 = vpack.c.b16 %v643, %v641
      %v706 = vpack.c.b16 %v646, %v644
      %v707 = vpack.c.b16 %v647, %v645
      %v708 = vpack.c.b16 %v650, %v648
      %v709 = vpack.c.b16 %v651, %v649
      %v710 = vpack.c.b16 %v654, %v652
      %v711 = vpack.c.b16 %v655, %v653
      %v712 = vpack.c.b16 %v658, %v656
      %v713 = vpack.c.b16 %v659, %v657
      %v714 = vpack.c.b16 %v662, %v660
      %v715 = vpack.c.b16 %v663, %v661
      %v716 = vpack.c.b16 %v666, %v664
      %v717 = vpack.c.b16 %v667, %v665
      %v718 = vpack.c.b16 %v670, %v668
      %v719 = vpack.c.b16 %v671, %v669
      %v720 = vpack.c.b16 %v674, %v672
      %v721 = vpack.c.b16 %v675, %v673
      %v722 = vpack.c.b16 %v678, %v676
      %v723 = vpack.c.b16 %v679, %v677
      %v724 = vpack.c.b16 %v682, %v680
      %v725 = vpack.c.b16 %v683, %v681
      %v726 = vpack.c.b16 %v686, %v684
      %v727 = vpack.c.b16 %v687, %v685
      %v728 = vpack.c.b16 %v690, %v688
      %v729 = vpack.c.b16 %v691, %v689
      %v730 = vpack.c.b16 %v694, %v692
      %v731 = vpack.c.b16 %v695, %v693
      %v732 = vpack.c.b16 %v698, %v696
      %v733 = vpack.c.b16 %v699, %v697
      %v734 = vpack.c.b16 %v702, %v700
      %v735 = vpack.c.b16 %v703, %v701
      %768 = vmatprep.subr.bf16.mxu0 %v705
      %769 = vmatpush1.bf16.msra.mxu0 %v704
      %770 = vmatprep.subr.bf16.mxu0 %v707
      %771 = vmatpush1.bf16.msra.mxu0 %v706
      %772 = vmatprep.subr.bf16.mxu0 %v709
      %773 = vmatpush1.bf16.msra.mxu0 %v708
      %774 = vmatprep.subr.bf16.mxu0 %v711
      %775 = vmatpush1.bf16.msra.mxu0 %v710
      %776 = vmatprep.subr.bf16.mxu0 %v713
      %777 = vmatpush1.bf16.msra.mxu0 %v712
      %778 = vmatprep.subr.bf16.mxu0 %v715
      %779 = vmatpush1.bf16.msra.mxu0 %v714
      %780 = vmatprep.subr.bf16.mxu0 %v717
      %781 = vmatpush1.bf16.msra.mxu0 %v716
      %782 = vmatprep.subr.bf16.mxu0 %v719
      %783 = vmatpush1.bf16.msra.mxu0 %v718
      %784 = vmatprep.subr.bf16.mxu0 %v721
      %785 = vmatpush1.bf16.msra.mxu0 %v720
      %786 = vmatprep.subr.bf16.mxu0 %v723
      %787 = vmatpush1.bf16.msra.mxu0 %v722
      %788 = vmatprep.subr.bf16.mxu0 %v725
      %789 = vmatpush1.bf16.msra.mxu0 %v724
      %790 = vmatprep.subr.bf16.mxu0 %v727
      %791 = vmatpush1.bf16.msra.mxu0 %v726
      %792 = vmatprep.subr.bf16.mxu0 %v729
      %793 = vmatpush1.bf16.msra.mxu0 %v728
      %794 = vmatprep.subr.bf16.mxu0 %v731
      %795 = vmatpush1.bf16.msra.mxu0 %v730
      %796 = vmatprep.subr.bf16.mxu0 %v733
      %797 = vmatpush1.bf16.msra.mxu0 %v732
      %798 = vmatprep.subr.bf16.mxu0 %v735
      %799 = vmatpush1.bf16.msra.mxu0 %v734
      %800 = vmatprep.mubr.bf16.mxu0 %v575
      %801 = vmatmul.mubr.bf16.gmra.mrb[0].mxu0 %v574
      %v802 = vpop.f32.mrb[0].mxu0
      %v803 = vadd.f32 0.0, %v802
      %v804 = vpop.f32.mrb[0].mxu0
      %v805 = vadd.f32 0.0, %v804
      %v806 = vpop.f32.mrb[0].mxu0
      %v807 = vpop.f32.mrb[0].mxu0
      %808 = vdwg.mxu0
      %v809 = vmax.f32 %v803, 0.0
      %v810 = vmax.f32 %v805, 0.0
      %v811 = vpack.c.bf16 %v809, %v809
      %v812 = vpack.c.bf16 %v810, %v810
      %v813 = vld [vmem:[%s4] sm:$0xff]
      %v814 = vld [vmem:[%s4 + $0x8] sm:$0xff]
      %v815 = vld [vmem:[%s4 + $0x10] sm:$0xff]
      %v816 = vld [vmem:[%s4 + $0x18] sm:$0xff]
      %v817 = vld [vmem:[%s4 + $0x20] sm:$0xff]
      %v818 = vld [vmem:[%s4 + $0x28] sm:$0xff]
      %v819 = vld [vmem:[%s4 + $0x30] sm:$0xff]
      %v820 = vld [vmem:[%s4 + $0x38] sm:$0xff]
      %v821 = vld [vmem:[%s4 + $0x40] sm:$0xff]
      %v822 = vld [vmem:[%s4 + $0x48] sm:$0xff]
      %v823 = vld [vmem:[%s4 + $0x50] sm:$0xff]
      %v824 = vld [vmem:[%s4 + $0x58] sm:$0xff]
      %v825 = vld [vmem:[%s4 + $0x60] sm:$0xff]
      %v826 = vld [vmem:[%s4 + $0x68] sm:$0xff]
      %v827 = vld [vmem:[%s4 + $0x70] sm:$0xff]
      %v828 = vld [vmem:[%s4 + $0x78] sm:$0xff]
      %v829 = vld [vmem:[%s4 + $0x80] sm:$0xff]
      %v830 = vld [vmem:[%s4 + $0x88] sm:$0xff]
      %v831 = vld [vmem:[%s4 + $0x90] sm:$0xff]
      %v832 = vld [vmem:[%s4 + $0x98] sm:$0xff]
      %v833 = vld [vmem:[%s4 + $0xa0] sm:$0xff]
      %v834 = vld [vmem:[%s4 + $0xa8] sm:$0xff]
      %v835 = vld [vmem:[%s4 + $0xb0] sm:$0xff]
      %v836 = vld [vmem:[%s4 + $0xb8] sm:$0xff]
      %v837 = vld [vmem:[%s4 + $0xc0] sm:$0xff]
      %v838 = vld [vmem:[%s4 + $0xc8] sm:$0xff]
      %v839 = vld [vmem:[%s4 + $0xd0] sm:$0xff]
      %v840 = vld [vmem:[%s4 + $0xd8] sm:$0xff]
      %v841 = vld [vmem:[%s4 + $0xe0] sm:$0xff]
      %v842 = vld [vmem:[%s4 + $0xe8] sm:$0xff]
      %v843 = vld [vmem:[%s4 + $0xf0] sm:$0xff]
      %v844 = vld [vmem:[%s4 + $0xf8] sm:$0xff]
      %v877 = vunpack.c.l.b16 %v813
      %v878 = vunpack.c.h.b16 %v813
      %v879 = vunpack.c.l.b16 %v814
      %v880 = vunpack.c.h.b16 %v814
      %v881 = vunpack.c.l.b16 %v815
      %v882 = vunpack.c.h.b16 %v815
      %v883 = vunpack.c.l.b16 %v816
      %v884 = vunpack.c.h.b16 %v816
      %v885 = vunpack.c.l.b16 %v817
      %v886 = vunpack.c.h.b16 %v817
      %v887 = vunpack.c.l.b16 %v818
      %v888 = vunpack.c.h.b16 %v818
      %v889 = vunpack.c.l.b16 %v819
      %v890 = vunpack.c.h.b16 %v819
      %v891 = vunpack.c.l.b16 %v820
      %v892 = vunpack.c.h.b16 %v820
      %v893 = vunpack.c.l.b16 %v821
      %v894 = vunpack.c.h.b16 %v821
      %v895 = vunpack.c.l.b16 %v822
      %v896 = vunpack.c.h.b16 %v822
      %v897 = vunpack.c.l.b16 %v823
      %v898 = vunpack.c.h.b16 %v823
      %v899 = vunpack.c.l.b16 %v824
      %v900 = vunpack.c.h.b16 %v824
      %v901 = vunpack.c.l.b16 %v825
      %v902 = vunpack.c.h.b16 %v825
      %v903 = vunpack.c.l.b16 %v826
      %v904 = vunpack.c.h.b16 %v826
      %v905 = vunpack.c.l.b16 %v827
      %v906 = vunpack.c.h.b16 %v827
      %v907 = vunpack.c.l.b16 %v828
      %v908 = vunpack.c.h.b16 %v828
      %v909 = vunpack.c.l.b16 %v829
      %v910 = vunpack.c.h.b16 %v829
      %v911 = vunpack.c.l.b16 %v830
      %v912 = vunpack.c.h.b16 %v830
      %v913 = vunpack.c.l.b16 %v831
      %v914 = vunpack.c.h.b16 %v831
      %v915 = vunpack.c.l.b16 %v832
      %v916 = vunpack.c.h.b16 %v832
      %v917 = vunpack.c.l.b16 %v833
      %v918 = vunpack.c.h.b16 %v833
      %v919 = vunpack.c.l.b16 %v834
      %v920 = vunpack.c.h.b16 %v834
      %v921 = vunpack.c.l.b16 %v835
      %v922 = vunpack.c.h.b16 %v835
      %v923 = vunpack.c.l.b16 %v836
      %v924 = vunpack.c.h.b16 %v836
      %v925 = vunpack.c.l.b16 %v837
      %v926 = vunpack.c.h.b16 %v837
      %v927 = vunpack.c.l.b16 %v838
      %v928 = vunpack.c.h.b16 %v838
      %v929 = vunpack.c.l.b16 %v839
      %v930 = vunpack.c.h.b16 %v839
      %v931 = vunpack.c.l.b16 %v840
      %v932 = vunpack.c.h.b16 %v840
      %v933 = vunpack.c.l.b16 %v841
      %v934 = vunpack.c.h.b16 %v841
      %v935 = vunpack.c.l.b16 %v842
      %v936 = vunpack.c.h.b16 %v842
      %v937 = vunpack.c.l.b16 %v843
      %v938 = vunpack.c.h.b16 %v843
      %v939 = vunpack.c.l.b16 %v844
      %v940 = vunpack.c.h.b16 %v844
      %v941 = vpack.c.b16 %v879, %v877
      %v942 = vpack.c.b16 %v880, %v878
      %v943 = vpack.c.b16 %v883, %v881
      %v944 = vpack.c.b16 %v884, %v882
      %v945 = vpack.c.b16 %v887, %v885
      %v946 = vpack.c.b16 %v888, %v886
      %v947 = vpack.c.b16 %v891, %v889
      %v948 = vpack.c.b16 %v892, %v890
      %v949 = vpack.c.b16 %v895, %v893
      %v950 = vpack.c.b16 %v896, %v894
      %v951 = vpack.c.b16 %v899, %v897
      %v952 = vpack.c.b16 %v900, %v898
      %v953 = vpack.c.b16 %v903, %v901
      %v954 = vpack.c.b16 %v904, %v902
      %v955 = vpack.c.b16 %v907, %v905
      %v956 = vpack.c.b16 %v908, %v906
      %v957 = vpack.c.b16 %v911, %v909
      %v958 = vpack.c.b16 %v912, %v910
      %v959 = vpack.c.b16 %v915, %v913
      %v960 = vpack.c.b16 %v916, %v914
      %v961 = vpack.c.b16 %v919, %v917
      %v962 = vpack.c.b16 %v920, %v918
      %v963 = vpack.c.b16 %v923, %v921
      %v964 = vpack.c.b16 %v924, %v922
      %v965 = vpack.c.b16 %v927, %v925
      %v966 = vpack.c.b16 %v928, %v926
      %v967 = vpack.c.b16 %v931, %v929
      %v968 = vpack.c.b16 %v932, %v930
      %v969 = vpack.c.b16 %v935, %v933
      %v970 = vpack.c.b16 %v936, %v934
      %v971 = vpack.c.b16 %v939, %v937
      %v972 = vpack.c.b16 %v940, %v938
      %1005 = vmatprep.subr.bf16.mxu0 %v942
      %1006 = vmatpush1.bf16.msra.mxu0 %v941
      %1007 = vmatprep.subr.bf16.mxu0 %v944
      %1008 = vmatpush1.bf16.msra.mxu0 %v943
      %1009 = vmatprep.subr.bf16.mxu0 %v946
      %1010 = vmatpush1.bf16.msra.mxu0 %v945
      %1011 = vmatprep.subr.bf16.mxu0 %v948
      %1012 = vmatpush1.bf16.msra.mxu0 %v947
      %1013 = vmatprep.subr.bf16.mxu0 %v950
      %1014 = vmatpush1.bf16.msra.mxu0 %v949
      %1015 = vmatprep.subr.bf16.mxu0 %v952
      %1016 = vmatpush1.bf16.msra.mxu0 %v951
      %1017 = vmatprep.subr.bf16.mxu0 %v954
      %1018 = vmatpush1.bf16.msra.mxu0 %v953
      %1019 = vmatprep.subr.bf16.mxu0 %v956
      %1020 = vmatpush1.bf16.msra.mxu0 %v955
      %1021 = vmatprep.subr.bf16.mxu0 %v958
      %1022 = vmatpush1.bf16.msra.mxu0 %v957
      %1023 = vmatprep.subr.bf16.mxu0 %v960
      %1024 = vmatpush1.bf16.msra.mxu0 %v959
      %1025 = vmatprep.subr.bf16.mxu0 %v962
      %1026 = vmatpush1.bf16.msra.mxu0 %v961
      %1027 = vmatprep.subr.bf16.mxu0 %v964
      %1028 = vmatpush1.bf16.msra.mxu0 %v963
      %1029 = vmatprep.subr.bf16.mxu0 %v966
      %1030 = vmatpush1.bf16.msra.mxu0 %v965
      %1031 = vmatprep.subr.bf16.mxu0 %v968
      %1032 = vmatpush1.bf16.msra.mxu0 %v967
      %1033 = vmatprep.subr.bf16.mxu0 %v970
      %1034 = vmatpush1.bf16.msra.mxu0 %v969
      %1035 = vmatprep.subr.bf16.mxu0 %v972
      %1036 = vmatpush1.bf16.msra.mxu0 %v971
      %1037 = vmatprep.mubr.bf16.mxu0 %v812
      %1038 = vmatmul.mubr.bf16.gmra.mrb[0].mxu0 %v811
      %v1039 = vpop.f32.mrb[0].mxu0
      %v1040 = vadd.f32 0.0, %v1039
      %v1041 = vpop.f32.mrb[0].mxu0
      %v1042 = vadd.f32 0.0, %v1041
      %v1043 = vpop.f32.mrb[0].mxu0
      %v1044 = vpop.f32.mrb[0].mxu0
      %1045 = vdwg.mxu0
      %v1046 = vxor.u32 %v1040, 2147483648
      %v1047 = vxor.u32 %v1042, 2147483648
      %v1048 = vmul.f32 %v1046, 1.442695
      %v1049 = vpow.pop %v1048
      %v1050 = vmul.f32 %v1047, 1.442695
      %v1051 = vpow.pop %v1050
      %v1052 = vadd.f32 %v1049, 1.0
      %v1053 = vadd.f32 %v1051, 1.0
      %v1054 = vrcp.pop %v1052
      %v1055 = vmul.f32 1.0, %v1054
      %v1056 = vrcp.pop %v1053
      %v1057 = vmul.f32 1.0, %v1056
      %v1060 = vcombine.low %v1055, %v1057
      %v1062 = vunpack.c.l.s4 1966171168
      %v1063 = vunpack.c.0.s8 %v1062
      %v1064 = vlaneseq
      %v1065 = vshrl.u32 %v1064, 7
      %v1066 = vsub.s32 %v1063, %v1065
      %v1067 = vrot.slane %v1060, %v1066
      %v1069 = vunpack.c.l.s4 1966171168
      %v1070 = vunpack.c.0.s8 %v1069
      %v1071 = vlaneseq
      %v1072 = vshrl.u32 %v1071, 7
      %v1073 = vsub.s32 %v1070, %v1072
      %v1074 = vrot.slane %v1067, %v1073
      %v1076 = vlaneseq
      %vm1077 = vcmp.ge.s32.totalorder %v1076, 0
      %vm1078 = vcmp.lt.s32.totalorder %v1076, 256
      %vm1079 = vmand %vm1077, %vm1078
      %1080 = vst.msk [vmem:[%s242] sm:$0x3] %vm1079, %v1074
      %p1081 = scmp.lt.s32.totalorder %s16, 1
      %s1082 = scalar_select %p1081, %s16, 1
      %s1083 = smul.addr %s1082, 2
      %s1084 = scalar_lea.vmem %s5, %s1083
      // Predicated region
      $region41: #{mirror_attention.1} parent=39 // pred_check
        %p1085 = pneg %p149
      $region42: #{mirror_attention.1} parent=39 // pred_check_branch
        %1087 = sbr.rel (%p1085) target = $region44
      $region43: #{mirror_attention.1} parent=39 // pred_region
        _
      $region44: #{mirror_attention.1} parent=39 // pred_fallthru
        _
    $region40: #{mirror_attention.1} parent=5 // pred_fallthru
      _
    %p1088 = scmp.le.s32.totalorder 2, %s11
    // Predicated region
    $region45: #{mirror_attention.1} parent=5 // pred_check
      %p1089 = pneg %p1088
    $region46: #{mirror_attention.1} parent=5 // pred_check_branch
      %1091 = sbr.rel (%p1089) target = $region48
    $region47: #{mirror_attention.1} parent=5 // pred_region
      %s1092 = ssub.s32 %s11, 2
      // Predicated region
      $region49: #{mirror_attention.1} parent=47 // pred_check
        %p1093 = pneg %p155
      $region50: #{mirror_attention.1} parent=47 // pred_check_branch
        %1095 = sbr.rel (%p1093) target = $region52
      $region51: #{mirror_attention.1} parent=47 // pred_region
        %p1096 = scmp.lt.s32.totalorder %s17, 1
        %s1097 = scalar_select %p1096, %s17, 1
        %s1098 = smul.addr %s1097, 2
        %s1099 = scalar_lea.vmem %s5, %s1098
      $region52: #{mirror_attention.1} parent=47 // pred_fallthru
        _
    $region48: #{mirror_attention.1} parent=5 // pred_fallthru
      _
  $region6: #{mirror_attention.1} parent=0 // loop_footer
    %s15 = sadd.s32 1, %s11
  $region7: #{mirror_attention.1} parent=0 // loop_footer_branch
    %10 = sbr.rel target = $region3
  $region8: #{mirror_attention.1} parent=0 // loop_exit
    _

</llo_original>
